<compile_context>
chip_gen: v6e
topology: v6e:2x2x1
jax: 0.10.0
libtpu: 0.0.40
codegen_flags: <defaults>
</compile_context>

<pallas_src>
import functools

import jax
import jax.numpy as jnp
from jax.experimental import pallas as pl
from jax.experimental.pallas import tpu as pltpu


def _round_up(x, m):
    return ((x + m - 1) // m) * m


def _linear_kernel(x_ref, w_ref, b_ref, o_ref):
    # x_ref: (tm, K) bf16, w_ref: (K, tn) bf16, b_ref: (1, tn) f32,
    # o_ref: (tm, tn) bf16.  One full-K MXU matmul per tile; accumulate in
    # f32, add bias in f32, cast to bf16 only on the store.
    acc = jnp.dot(x_ref[...], w_ref[...], preferred_element_type=jnp.float32)
    o_ref[...] = (acc + b_ref[...]).astype(o_ref.dtype)


def _choose_tiles(M, K, n_pad, vmem_cap_bytes):
    """Pick (tm, tn) so the double-buffered working set fits vmem_cap_bytes."""
    tm = min(512, _round_up(M, 8))
    # Give the megacore (v7x: 2 TCs) at least two row tiles to split.
    if -(-M // tm) < 2 and M >= 16:
        tm = _round_up(-(-M // 2), 8)
    tn = n_pad  # full weight resident whenever it fits

    def budget(tm_, tn_):
        # bf16 x tile + bf16 weight slab + f32 bias + bf16 out tile, each
        # double-buffered by the Pallas pipeline.
        return 2 * (tm_ * K * 2 + K * tn_ * 2 + tn_ * 4 + tm_ * tn_ * 2)

    while budget(tm, tn) > vmem_cap_bytes and tn > 128:
        tn = _round_up(tn // 2, 128)
    while budget(tm, tn) > vmem_cap_bytes and tm > 128:
        tm = max(128, _round_up(tm // 2, 8))
    return tm, tn, budget(tm, tn)


def pallas_linear(x2d_bf16, w_bf16, bias_f32, *, vmem_cap_bytes=40 * 1024 * 1024):
    """y = x2d @ w + b on the MXU.  bf16 in / bf16 out, f32 accumulation.

    x2d_bf16: (M, K) bf16; w_bf16: (K, n_pad) bf16 with n_pad % 128 == 0
    (lane-dense stores); bias_f32: (1, n_pad) f32.  Returns (M, n_pad) bf16.
    """
    M, K = x2d_bf16.shape
    Kw, n_pad = w_bf16.shape
    assert K == Kw and n_pad % 128 == 0 and bias_f32.shape == (1, n_pad)

    tm, tn, budget = _choose_tiles(M, K, n_pad, vmem_cap_bytes)

    # N axis OUTER, M axis inner: the weight block index only changes when j
    # changes, so Pallas fetches each (K, tn) weight slab exactly once (once
    # total when tn == n_pad) while the activation rows stream underneath.
    grid_n = pl.cdiv(n_pad, tn)
    grid_m = pl.cdiv(M, tm)
    grid = (grid_n, grid_m)

    cost = pl.CostEstimate(
        flops=2 * M * K * n_pad,
        transcendentals=0,
        bytes_accessed=(grid_n * M * K * 2)  # activations (re-streamed only if grid_n > 1)
        + (K * n_pad * 2)                    # weight read once
        + (M * n_pad * 2)                    # bf16 output write
        + (n_pad * 4),                       # bias
    )

    # Explicit scoped-VMEM limit: raises v5e's 16 MiB default, stays within
    # v7x's 64 MiB/TC physical VMEM.
    vmem_limit = min(48 * 1024 * 1024,
                     max(32 * 1024 * 1024, budget + 8 * 1024 * 1024))

    # Partial edge tiles are handled by the cdiv grid: out-of-bounds rows/cols
    # feed only discarded output elements and there is no cross-tile reduction.
    return pl.pallas_call(
        _linear_kernel,
        out_shape=jax.ShapeDtypeStruct((M, n_pad), jnp.bfloat16),
        grid_spec=pltpu.PrefetchScalarGridSpec(
            num_scalar_prefetch=0,
            grid=grid,
            in_specs=[
                pl.BlockSpec((tm, K), lambda j, i: (i, 0)),   # activation rows (stream)
                pl.BlockSpec((K, tn), lambda j, i: (0, j)),   # weight slab (resident per j)
                pl.BlockSpec((1, tn), lambda j, i: (0, j)),   # bias slab
            ],
            out_specs=pl.BlockSpec((tm, tn), lambda j, i: (i, j)),
        ),
        compiler_params=pltpu.CompilerParams(
            dimension_semantics=("parallel", "parallel"),
            vmem_limit_bytes=vmem_limit,
        ),
        cost_estimate=cost,
    )(x2d_bf16, w_bf16, bias_f32)


def prepare_linear_params(weight, bias):
    """One-time (init-path) prep: pad N to a multiple of 128 for lane-dense
    stores and cast the weight to bf16.  Keeps the per-step forward free of
    repeated pad/convert passes."""
    K, n_out = weight.shape
    n_pad = _round_up(n_out, 128)
    if n_pad != n_out:
        weight = jnp.pad(weight, ((0, 0), (0, n_pad - n_out)))
        bias = jnp.pad(bias, ((0, n_pad - n_out),))
    w_bf16 = weight.astype(jnp.bfloat16)
    bias_f32 = bias.reshape(1, n_pad).astype(jnp.float32)
    return w_bf16, bias_f32, n_out


def patch_merging_forward(x_nchw, w_bf16, bias_f32, *, n_out, merge_dim=(2, 2)):
    """Forward pass matching the PyTorch PatchMerging module.

    x_nchw: (N, C, W, H) float32
    w_bf16: (C*mh*mw, n_pad) bf16 (from prepare_linear_params)
    bias_f32: (1, n_pad) f32
    returns (N, n_out, W // mh, H // mw) float32
    """
    N, C, W, H = x_nchw.shape
    mh, mw = merge_dim
    assert W % mh == 0 and H % mw == 0
    W2, H2 = W // mh, H // mw
    K = C * mh * mw

    # Patch gather as a single fused cast+copy: cast to bf16 FIRST so the one
    # reshape+transpose XLA emits reads f32 and writes bf16 (half the write
    # traffic), and the kernel then streams bf16 directly.  The resulting
    # (i, j, c) channel order matches the PyTorch concat order exactly.
    # TODO(synk): pull this gather into the kernel (raw NCHW block + on-chip
    # (mh, mw, C) shuffle on the idle XLU) to drop this HBM->HBM pass entirely.
    x_bf16 = x_nchw.astype(jnp.bfloat16)
    x6 = x_bf16.reshape(N, C, W2, mh, H2, mw)
    x6 = jnp.transpose(x6, (0, 2, 4, 3, 5, 1))       # (N, W2, H2, mh, mw, C)
    x2d = x6.reshape(N * W2 * H2, K)

    # Hot path: linear layer on the MXU (bf16 out, f32 accumulate).
    y2d = pallas_linear(x2d, w_bf16, bias_f32)

    y = y2d[:, :n_out].reshape(N, W2, H2, n_out)
    # NCHW output is part of the module contract; the f32 upcast fuses into
    # this transpose copy so it costs one pass, not two.
    # TODO(synk): drop this transpose if the surrounding model consumes NHWC.
    return jnp.transpose(y, (0, 3, 1, 2)).astype(jnp.float32)


if __name__ == "__main__":
    # Small shapes consistent with the module's forward:
    # batch=2, in_channels=4, spatial 16x16, merge (2,2), out_channels=8.
    N, C, W, H = 2, 4, 16, 16
    merge_dim = (2, 2)
    out_channels = 8
    K = C * merge_dim[0] * merge_dim[1]

    key = jax.random.PRNGKey(0)
    kx, kw, kb = jax.random.split(key, 3)

    x = jax.random.normal(kx, (N, C, W, H), dtype=jnp.float32)
    # nn.Linear(K, out_channels)-shaped synthetic parameters.
    weight = jax.random.normal(kw, (K, out_channels), dtype=jnp.float32) * 0.05
    bias = jax.random.normal(kb, (out_channels,), dtype=jnp.float32) * 0.01

    # One-time parameter prep (init path), outside the jitted forward.
    w_bf16, bias_f32, n_out = prepare_linear_params(weight, bias)

    fwd = jax.jit(functools.partial(patch_merging_forward,
                                    n_out=n_out, merge_dim=merge_dim))
    out = fwd(x, w_bf16, bias_f32)
    jax.block_until_ready(out)

    # Pure-JAX f32 reference computed the same way as the PyTorch module
    # (permute + strided slices + concat), independent of the kernel's path.
    xr = jnp.transpose(x, (0, 2, 3, 1))
    pieces = [xr[:, i::2, j::2, :] for i in range(2) for j in range(2)]
    xr = jnp.concatenate(pieces, axis=-1).reshape(-1, K)
    ref = (xr @ weight + bias).reshape(N, W // 2, H // 2, out_channels)
    ref = jnp.transpose(ref, (0, 3, 1, 2))

    assert out.shape == (N, out_channels, W // 2, H // 2)
    # bf16 matmul inputs + bf16 kernel output -> relaxed tolerance vs f32 ref.
    assert jnp.allclose(out, ref, atol=2e-2, rtol=2e-2), float(
        jnp.max(jnp.abs(out - ref))
    )

    print("KERNEL_OK")
</pallas_src>

<mosaic_0001>
module attributes {stable_mosaic.version = 11 : i64} {
  func.func @_linear_kernel(%arg0: i32, %arg1: i32, %arg2: memref<64x16xbf16, #tpu.memory_space<vmem>>, %arg3: memref<16x128xbf16, #tpu.memory_space<vmem>>, %arg4: memref<1x128xf32, #tpu.memory_space<vmem>>, %arg5: memref<64x128xbf16, #tpu.memory_space<vmem>>) attributes {dimension_semantics = [#tpu.dimension_semantics<parallel>, #tpu.dimension_semantics<parallel>], iteration_bounds = array<i64: 1, 2>, scalar_prefetch = 0 : i64, scratch_operands = 0 : i64, tpu.core_type = #tpu.core_type<tc>, window_params = [{transform_indices = @transform_0, window_bounds = array<i64: 64, 16>}, {transform_indices = @transform_1, window_bounds = array<i64: 16, 128>}, {transform_indices = @transform_2, window_bounds = array<i64: 1, 128>}, {transform_indices = @transform_3, window_bounds = array<i64: 64, 128>}]} {
    %c0 = arith.constant 0 : index
    %c0_0 = arith.constant 0 : index
    %0 = vector.load %arg2[%c0, %c0_0] : memref<64x16xbf16, #tpu.memory_space<vmem>>, vector<64x16xbf16>
    %c0_1 = arith.constant 0 : index
    %c0_2 = arith.constant 0 : index
    %1 = vector.load %arg3[%c0_1, %c0_2] : memref<16x128xbf16, #tpu.memory_space<vmem>>, vector<16x128xbf16>
    %cst = arith.constant dense<0.000000e+00> : vector<64x128xf32>
    %2 = tpu.matmul %0, %1, %cst {dimension_numbers = #tpu.dot_dimension_numbers<[1], [0], [0], [1], [0, 0, 1, 1], [], []>} : vector<64x16xbf16>, vector<16x128xbf16>, vector<64x128xf32> -> vector<64x128xf32>
    %c0_3 = arith.constant 0 : index
    %c0_4 = arith.constant 0 : index
    %3 = vector.load %arg4[%c0_3, %c0_4] : memref<1x128xf32, #tpu.memory_space<vmem>>, vector<1x128xf32>
    %4 = vector.broadcast %3 : vector<1x128xf32> to vector<64x128xf32>
    %5 = arith.addf %2, %4 : vector<64x128xf32>
    %6 = arith.truncf %5 : vector<64x128xf32> to vector<64x128xbf16>
    %c0_5 = arith.constant 0 : index
    %c0_6 = arith.constant 0 : index
    %7 = vector.load %arg5[%c0_5, %c0_6] : memref<64x128xbf16, #tpu.memory_space<vmem>>, vector<64x128xbf16>
    tpu.vector_store %arg5[%c0_5, %c0_6], %6 {strides = array<i32>} : memref<64x128xbf16, #tpu.memory_space<vmem>>, vector<64x128xbf16>,
    return
  }
  func.func @transform_0(%arg0: i32, %arg1: i32) -> (i32, i32) {
    %c0_i32 = arith.constant 0 : i32
    %c0_i32_0 = arith.constant 0 : i32
    return %arg1, %c0_i32 : i32, i32
  }
  func.func @transform_1(%arg0: i32, %arg1: i32) -> (i32, i32) {
    %c0_i32 = arith.constant 0 : i32
    %c0_i32_0 = arith.constant 0 : i32
    return %c0_i32, %arg0 : i32, i32
  }
  func.func @transform_2(%arg0: i32, %arg1: i32) -> (i32, i32) {
    %c0_i32 = arith.constant 0 : i32
    %c0_i32_0 = arith.constant 0 : i32
    return %c0_i32, %arg0 : i32, i32
  }
  func.func @transform_3(%arg0: i32, %arg1: i32) -> (i32, i32) {
    %c0_i32 = arith.constant 0 : i32
    return %arg1, %arg0 : i32, i32
  }
}

</mosaic_0001>

<llo_original>
// kernel: patch_merging_forward.1
$region0: #{patch_merging_forward.1}
  #allocation0 [shape = 'u32[]', space=smem, size = 0x4, offset = 0x4, fixed_abs, tag = 'smem constant byte address 0x4 - core index']
  #allocation1 [shape = 'u32[144,128]{1,0:T(1,128)}', space=vmem, size = 0x12000, scoped, tag = 'internal scratch']
  %s0 = inlined_call_operand.vmem [shape: bf16[128,16], index: 0, kind: input, shape index: {}]
  %s1 = inlined_call_operand.vmem [shape: bf16[16,128], index: 1, kind: input, shape index: {}]
  %s2 = inlined_call_operand.vmem [shape: f32[1,128], index: 2, kind: input, shape index: {}]
  %s3 = inlined_call_operand.vmem [shape: bf16[128,128], index: 3, kind: output, shape index: {}]
  %s4 = sld [smem:[#allocation0]]
  $region45: #{patch_merging_forward.1} parent=0
    _
  %s6 = ssub.s32 1, %s4
  %s7 = scalar_select 0, %s6, %s4
  loop: start=0, step=1, limit=4
  $region2: #{patch_merging_forward.1} parent=0 // loop_pre_header
    _
  $region3: #{patch_merging_forward.1} parent=0 // loop_header
    %s9 = sphi 0, %s13
    %p10 = scmp.ge.s32.totalorder %s9, 4
    %s16 = sphi 0, %s28
    %s17 = sphi 0, %s24
    %s18 = sphi 0, %s16
    %s19 = sphi 0, %s17
    %s20 = sphi 0, %s18
    %s21 = sphi 0, %s19
    %s31 = sphi 0, %s33
    %s34 = sphi 0, %s31
    %s35 = sphi 0, %s34
    %s51 = sphi 0, %s35
    %s57 = sphi 0, %s59
    %s60 = sphi 0, %s57
    %s61 = sphi 0, %s60
    %s77 = sphi 0, %s61
    %s83 = sphi 0, %s85
    %s86 = sphi 0, %s83
    %s87 = sphi 0, %s86
    %s103 = sphi 0, %s87
    %s111 = sphi 0, %s113
    %s114 = sphi 0, %s111
    %s115 = sphi 0, %s114
    %s131 = sphi 0, %s115
  $region4: #{patch_merging_forward.1} parent=0 // loop_header_branch
    %12 = sbr.rel (%p10) target = $region8
  $region5: #{patch_merging_forward.1} parent=0 // loop_body
    %s14 = ssub.s32 %s9, 1
    %s15 = ssub.s32 %s9, 2
    %s22 = sadd.s32 1, %s17
    %p23 = scmp.ge.s32.totalorder %s22, 2
    %s24 = scalar_select %p23, 0, %s22
    %s25 = sadd.s32 1, %s16
    %s26 = scalar_select %p23, %s25, %s16
    %p27 = scmp.ge.s32.totalorder %s26, 1
    %s28 = scalar_select %p27, 0, %s26
    %s29 = ssub.s32 %s17, %s24
    %p30 = scmp.eq.s32.totalorder %s29, 0
    %s32 = sadd.s32 %s31, 1
    %s33 = scalar_select %p30, %s31, %s32
    %p36 = pneg %p30
    %p37 = scmp.eq.s32.totalorder %s9, 1
    %p38 = por %p36, %p37
    %p39 = scmp.ne.s32.totalorder %s31, %s34
    %p40 = scmp.eq.s32.totalorder %s9, 0
    %p41 = por %p39, %p40
    %p42 = scmp.ne.s32.totalorder %s31, %s34
    %p43 = scmp.eq.s32.totalorder %s14, 1
    %p44 = por %p42, %p43
    %p45 = scmp.ne.s32.totalorder %s34, %s35
    %p46 = scmp.eq.s32.totalorder %s14, 0
    %p47 = por %p45, %p46
    %p48 = scmp.ne.s32.totalorder %s34, %s35
    %p49 = scmp.eq.s32.totalorder %s15, 1
    %p50 = por %p48, %p49
    %p52 = scmp.ne.s32.totalorder %s35, %s51
    %p53 = scmp.eq.s32.totalorder %s15, 0
    %p54 = por %p52, %p53
    %s55 = ssub.s32 %s16, %s28
    %p56 = scmp.eq.s32.totalorder %s55, 0
    %s58 = sadd.s32 %s57, 1
    %s59 = scalar_select %p56, %s57, %s58
    %p62 = pneg %p56
    %p63 = scmp.eq.s32.totalorder %s9, 1
    %p64 = por %p62, %p63
    %p65 = scmp.ne.s32.totalorder %s57, %s60
    %p66 = scmp.eq.s32.totalorder %s9, 0
    %p67 = por %p65, %p66
    %p68 = scmp.ne.s32.totalorder %s57, %s60
    %p69 = scmp.eq.s32.totalorder %s14, 1
    %p70 = por %p68, %p69
    %p71 = scmp.ne.s32.totalorder %s60, %s61
    %p72 = scmp.eq.s32.totalorder %s14, 0
    %p73 = por %p71, %p72
    %p74 = scmp.ne.s32.totalorder %s60, %s61
    %p75 = scmp.eq.s32.totalorder %s15, 1
    %p76 = por %p74, %p75
    %p78 = scmp.ne.s32.totalorder %s61, %s77
    %p79 = scmp.eq.s32.totalorder %s15, 0
    %p80 = por %p78, %p79
    %s81 = ssub.s32 %s16, %s28
    %p82 = scmp.eq.s32.totalorder %s81, 0
    %s84 = sadd.s32 %s83, 1
    %s85 = scalar_select %p82, %s83, %s84
    %p88 = pneg %p82
    %p89 = scmp.eq.s32.totalorder %s9, 1
    %p90 = por %p88, %p89
    %p91 = scmp.ne.s32.totalorder %s83, %s86
    %p92 = scmp.eq.s32.totalorder %s9, 0
    %p93 = por %p91, %p92
    %p94 = scmp.ne.s32.totalorder %s83, %s86
    %p95 = scmp.eq.s32.totalorder %s14, 1
    %p96 = por %p94, %p95
    %p97 = scmp.ne.s32.totalorder %s86, %s87
    %p98 = scmp.eq.s32.totalorder %s14, 0
    %p99 = por %p97, %p98
    %p100 = scmp.ne.s32.totalorder %s86, %s87
    %p101 = scmp.eq.s32.totalorder %s15, 1
    %p102 = por %p100, %p101
    %p104 = scmp.ne.s32.totalorder %s87, %s103
    %p105 = scmp.eq.s32.totalorder %s15, 0
    %p106 = por %p104, %p105
    %s107 = ssub.s32 %s17, %s24
    %s108 = ssub.s32 %s16, %s28
    %s109 = sor.u32 %s107, %s108
    %p110 = scmp.eq.s32.totalorder %s109, 0
    %s112 = sadd.s32 %s111, 1
    %s113 = scalar_select %p110, %s111, %s112
    %p116 = pneg %p110
    %p117 = scmp.eq.s32.totalorder %s9, 1
    %p118 = por %p116, %p117
    %p119 = scmp.ne.s32.totalorder %s111, %s114
    %p120 = scmp.eq.s32.totalorder %s9, 0
    %p121 = por %p119, %p120
    %p122 = scmp.ne.s32.totalorder %s111, %s114
    %p123 = scmp.eq.s32.totalorder %s14, 1
    %p124 = por %p122, %p123
    %p125 = scmp.ne.s32.totalorder %s114, %s115
    %p126 = scmp.eq.s32.totalorder %s14, 0
    %p127 = por %p125, %p126
    %p128 = scmp.ne.s32.totalorder %s114, %s115
    %p129 = scmp.eq.s32.totalorder %s15, 1
    %p130 = por %p128, %p129
    %p132 = scmp.ne.s32.totalorder %s115, %s131
    %p133 = scmp.eq.s32.totalorder %s15, 0
    %p134 = por %p132, %p133
    %p135 = scmp.le.s32.totalorder 1, %s9
    %p136 = scmp.lt.s32.totalorder %s9, 3
    %p137 = pnand %p135, %p136
    %p138 = pneg %p137
    // Predicated region
    $region9: #{patch_merging_forward.1} parent=5 // pred_check
      _
    $region10: #{patch_merging_forward.1} parent=5 // pred_check_branch
      %140 = sbr.rel (%p137) target = $region12
    $region11: #{patch_merging_forward.1} parent=5 // pred_region
      %s141 = ssub.s32 %s9, 1
      // Predicated region
      $region13: #{patch_merging_forward.1} parent=11 // pred_check
        %p142 = pneg %p73
      $region14: #{patch_merging_forward.1} parent=11 // pred_check_branch
        %144 = sbr.rel (%p142) target = $region16
      $region15: #{patch_merging_forward.1} parent=11 // pred_region
        %p145 = scmp.lt.s32.totalorder %s18, 0
        %s146 = scalar_select %p145, %s18, 0
        %s147 = smul.addr %s146, 4
        %s148 = scalar_lea.vmem %s1, %s147
      $region16: #{patch_merging_forward.1} parent=11 // pred_fallthru
        _
      // Predicated region
      $region17: #{patch_merging_forward.1} parent=11 // pred_check
        %p149 = pneg %p99
      $region18: #{patch_merging_forward.1} parent=11 // pred_check_branch
        %151 = sbr.rel (%p149) target = $region20
      $region19: #{patch_merging_forward.1} parent=11 // pred_region
        %p152 = scmp.lt.s32.totalorder %s18, 0
        %s153 = scalar_select %p152, %s18, 0
        %s154 = scalar_lea.vmem %s2, %s153
      $region20: #{patch_merging_forward.1} parent=11 // pred_fallthru
        _
    $region12: #{patch_merging_forward.1} parent=5 // pred_fallthru
      _
    %p155 = scmp.lt.s32.totalorder %s9, 2
    // Predicated region
    $region21: #{patch_merging_forward.1} parent=5 // pred_check
      %p156 = pneg %p155
    $region22: #{patch_merging_forward.1} parent=5 // pred_check_branch
      %158 = sbr.rel (%p156) target = $region24
    $region23: #{patch_merging_forward.1} parent=5 // pred_region
      // Predicated region
      $region25: #{patch_merging_forward.1} parent=23 // pred_check
        %p159 = pneg %p41
      $region26: #{patch_merging_forward.1} parent=23 // pred_check_branch
        %161 = sbr.rel (%p159) target = $region28
      $region27: #{patch_merging_forward.1} parent=23 // pred_region
        %s162 = smul.u32 8, %s17
        %p163 = scmp.lt.s32.totalorder %s162, 15
        %s164 = scalar_select %p163, %s162, 15
        %s165 = smul.addr %s164, 4
        %s166 = scalar_lea.vmem %s0, %s165
        %s167 = smul.u32 8, %s17
      $region28: #{patch_merging_forward.1} parent=23 // pred_fallthru
        _
    $region24: #{patch_merging_forward.1} parent=5 // pred_fallthru
      _
    %p168 = scmp.le.s32.totalorder 1, %s9
    %p169 = scmp.lt.s32.totalorder %s9, 3
    %p170 = pnand %p168, %p169
    %p171 = pneg %p170
    // Predicated region
    $region29: #{patch_merging_forward.1} parent=5 // pred_check
      _
    $region30: #{patch_merging_forward.1} parent=5 // pred_check_branch
      %173 = sbr.rel (%p170) target = $region32
    $region31: #{patch_merging_forward.1} parent=5 // pred_region
      %s174 = ssub.s32 %s9, 1
      %s175 = smul.u32 8, %s19
      %p176 = scmp.lt.s32.totalorder %s175, 15
      %s177 = scalar_select %p176, %s175, 15
      %s178 = smul.addr %s177, 4
      %s179 = scalar_lea.vmem %s0, %s178
      %p180 = pneg %p47
      %p181 = pneg %p44
      %p182 = scmp.lt.s32.totalorder %s18, 0
      %s183 = scalar_select %p182, %s18, 0
      %s184 = smul.addr %s183, 4
      %s185 = scalar_lea.vmem %s1, %s184
      %p186 = pneg %p73
      %p187 = pneg %p70
      %p188 = scmp.lt.s32.totalorder %s18, 0
      %s189 = scalar_select %p188, %s18, 0
      %s190 = scalar_lea.vmem %s2, %s189
      %p191 = pneg %p99
      %p192 = pneg %p96
      %p193 = pneg %p127
      %p194 = pneg %p124
      %s195 = smul.u32 8, %s19
      %p196 = scmp.lt.s32.totalorder %s195, 15
      %s197 = scalar_select %p196, %s195, 15
      %p198 = scmp.lt.s32.totalorder %s18, 0
      %s199 = scalar_select %p198, %s18, 0
      %s200 = sadd.s32 %s199, %s197
      %s201 = smul.addr %s200, 4
      %s202 = scalar_lea.vmem %s3, %s201
      %s203 = smul.u32 8, %s19
      %p204 = scmp.lt.s32.totalorder %s203, 15
      %s205 = scalar_select %p204, %s203, 15
      %s206 = smul.addr %s205, 4
      %s207 = scalar_lea.vmem %s0, %s206
      %s208 = smul.u32 8, %s19
      %p209 = scmp.lt.s32.totalorder %s18, 0
      %s210 = scalar_select %p209, %s18, 0
      %s211 = smul.addr %s210, 4
      %s212 = scalar_lea.vmem %s1, %s211
      %p213 = scmp.lt.s32.totalorder %s18, 0
      %s214 = scalar_select %p213, %s18, 0
      %s215 = scalar_lea.vmem %s2, %s214
      %s216 = smul.u32 8, %s19
      %p217 = scmp.lt.s32.totalorder %s216, 15
      %s218 = scalar_select %p217, %s216, 15
      %p219 = scmp.lt.s32.totalorder %s18, 0
      %s220 = scalar_select %p219, %s18, 0
      %s221 = sadd.s32 %s220, %s218
      %s222 = smul.addr %s221, 4
      %s223 = scalar_lea.vmem %s3, %s222
      %s224 = smul.u32 8, %s19
      %v226 = vld [vmem:[%s207] sm:$0xf]
      %v227 = vld [vmem:[%s207 + $0x4] sm:$0xf]
      %v228 = vld [vmem:[%s207 + $0x8] sm:$0xf]
      %v229 = vld [vmem:[%s207 + $0xc] sm:$0xf]
      %v230 = vld [vmem:[%s207 + $0x10] sm:$0xf]
      %v231 = vld [vmem:[%s207 + $0x14] sm:$0xf]
      %v232 = vld [vmem:[%s207 + $0x18] sm:$0xf]
      %v233 = vld [vmem:[%s207 + $0x1c] sm:$0xf]
      %v234 = vld [vmem:[%s212] sm:$0xf]
      %v235 = vld [vmem:[%s212 + $0x4] sm:$0xf]
      %v236 = vld [vmem:[%s215] sm:$0x1]
      %v238 = vlaneseq
      %v239 = vshrl.u32 %v238, 7
      %v240 = vsub.s32 0, %v239
      %v241 = vrot.slane %v236, %v240
      %v251 = vunpack.c.l.b16 %v226
      %v252 = vunpack.c.l.b16 %v227
      %v253 = vunpack.c.l.b16 %v228
      %v254 = vunpack.c.l.b16 %v229
      %v255 = vunpack.c.l.b16 %v230
      %v256 = vunpack.c.l.b16 %v231
      %v257 = vunpack.c.l.b16 %v232
      %v258 = vunpack.c.l.b16 %v233
      %v259 = vpack.c.b16 %v252, %v251
      %v260 = vpack.c.b16 %v254, %v253
      %v261 = vpack.c.b16 %v256, %v255
      %v262 = vpack.c.b16 %v258, %v257
      %v265 = vunpack.c.l.b16 %v234
      %v266 = vunpack.c.l.b16 %v235
      %v267 = vpack.c.b16 %v266, %v265
      %vm269 = vcmask 130048
      %v271 = vsel %vm269, %v259, 0
      %v274 = vsel %vm269, %v260, 0
      %v277 = vsel %vm269, %v261, 0
      %v280 = vsel %vm269, %v262, 0
      %282 = vmatprep.subr.bf16.mxu0 0
      %283 = vmatpush1.bf16.msra.mxu0 0
      %284 = vmatprep.subr.bf16.mxu0 0
      %285 = vmatpush1.bf16.msra.mxu0 0
      %286 = vmatprep.subr.bf16.mxu0 0
      %287 = vmatpush1.bf16.msra.mxu0 0
      %288 = vmatprep.subr.bf16.mxu0 0
      %289 = vmatpush1.bf16.msra.mxu0 0
      %290 = vmatprep.subr.bf16.mxu0 0
      %291 = vmatpush1.bf16.msra.mxu0 0
      %292 = vmatprep.subr.bf16.mxu0 0
      %293 = vmatpush1.bf16.msra.mxu0 0
      %294 = vmatprep.subr.bf16.mxu0 0
      %295 = vmatpush1.bf16.msra.mxu0 0
      %296 = vmatprep.subr.bf16.mxu0 0
      %297 = vmatpush1.bf16.msra.mxu0 %v267
      %298 = vmatprep.subr.bf16.mxu0 0
      %299 = vmatpush2.bf16.msra.mxu0 0
      %300 = vmatprep.subr.bf16.mxu0 0
      %301 = vmatpush2.bf16.msra.mxu0 0
      %302 = vmatprep.subr.bf16.mxu0 0
      %303 = vmatpush2.bf16.msra.mxu0 0
      %304 = vmatprep.subr.bf16.mxu0 0
      %305 = vmatpush2.bf16.msra.mxu0 0
      %306 = vmatprep.subr.bf16.mxu0 0
      %307 = vmatpush2.bf16.msra.mxu0 0
      %308 = vmatprep.subr.bf16.mxu0 0
      %309 = vmatpush2.bf16.msra.mxu0 0
      %310 = vmatprep.subr.bf16.mxu0 0
      %311 = vmatpush2.bf16.msra.mxu0 0
      %312 = vmatprep.subr.bf16.mxu0 0
      %313 = vmatpush2.bf16.msra.mxu0 0
      %314 = vmatprep.mubr.bf16.mxu0 0
      %315 = vmatmul.mubr.bf16.gmra.mxu0 %v271
      %v316 = vpop.f32.mrf.mxu0
      %v317 = vadd.f32 %v241, %v316
      %v318 = vpop.f32.mrf.mxu0
      %v319 = vpop.f32.mrf.mxu0
      %v320 = vadd.f32 %v241, %v319
      %v321 = vpop.f32.mrf.mxu0
      %322 = vmatprep.mubr.bf16.mxu0 0
      %323 = vmatmul.mubr.bf16.gmra.mxu0 %v274
      %v324 = vpop.f32.mrf.mxu0
      %v325 = vadd.f32 %v241, %v324
      %v326 = vpop.f32.mrf.mxu0
      %v327 = vpop.f32.mrf.mxu0
      %v328 = vadd.f32 %v241, %v327
      %v329 = vpop.f32.mrf.mxu0
      %330 = vmatprep.mubr.bf16.mxu0 0
      %331 = vmatmul.mubr.bf16.gmra.mxu0 %v277
      %v332 = vpop.f32.mrf.mxu0
      %v333 = vadd.f32 %v241, %v332
      %v334 = vpop.f32.mrf.mxu0
      %v335 = vpop.f32.mrf.mxu0
      %v336 = vadd.f32 %v241, %v335
      %v337 = vpop.f32.mrf.mxu0
      %338 = vmatprep.mubr.bf16.mxu0 0
      %339 = vmatmul.mubr.bf16.gmra.mxu0 %v280
      %v340 = vpop.f32.mrf.mxu0
      %v341 = vadd.f32 %v241, %v340
      %v342 = vpop.f32.mrf.mxu0
      %v343 = vpop.f32.mrf.mxu0
      %v344 = vadd.f32 %v241, %v343
      %v345 = vpop.f32.mrf.mxu0
      %346 = vdwg.mxu0
      %v347 = vpack.c.bf16 %v320, %v317
      %v348 = vpack.c.bf16 %v328, %v325
      %v349 = vpack.c.bf16 %v336, %v333
      %v350 = vpack.c.bf16 %v344, %v341
      %v355 = vunpack.c.l.b16 %v347
      %v356 = vunpack.c.h.b16 %v347
      %v357 = vunpack.c.l.b16 %v348
      %v358 = vunpack.c.h.b16 %v348
      %v359 = vunpack.c.l.b16 %v349
      %v360 = vunpack.c.h.b16 %v349
      %v361 = vunpack.c.l.b16 %v350
      %v362 = vunpack.c.h.b16 %v350
      %v363 = vpack.c.b16 %v355, %v355
      %v364 = vpack.c.b16 %v356, %v356
      %v365 = vpack.c.b16 %v357, %v357
      %v366 = vpack.c.b16 %v358, %v358
      %v367 = vpack.c.b16 %v359, %v359
      %v368 = vpack.c.b16 %v360, %v360
      %v369 = vpack.c.b16 %v361, %v361
      %v370 = vpack.c.b16 %v362, %v362
      %379 = vst [vmem:[%s223] sm:$0xf] %v363
      %380 = vst [vmem:[%s223 + $0x4] sm:$0xf] %v364
      %381 = vst [vmem:[%s223 + $0x8] sm:$0xf] %v365
      %382 = vst [vmem:[%s223 + $0xc] sm:$0xf] %v366
      %383 = vst [vmem:[%s223 + $0x10] sm:$0xf] %v367
      %384 = vst [vmem:[%s223 + $0x14] sm:$0xf] %v368
      %385 = vst [vmem:[%s223 + $0x18] sm:$0xf] %v369
      %386 = vst [vmem:[%s223 + $0x1c] sm:$0xf] %v370
      %s387 = smul.u32 8, %s19
      %p388 = scmp.lt.s32.totalorder %s387, 15
      %s389 = scalar_select %p388, %s387, 15
      %p390 = scmp.lt.s32.totalorder %s18, 0
      %s391 = scalar_select %p390, %s18, 0
      %s392 = sadd.s32 %s391, %s389
      %s393 = smul.addr %s392, 4
      %s394 = scalar_lea.vmem %s3, %s393
      // Predicated region
      $region33: #{patch_merging_forward.1} parent=31 // pred_check
        %p395 = pneg %p124
      $region34: #{patch_merging_forward.1} parent=31 // pred_check_branch
        %397 = sbr.rel (%p395) target = $region36
      $region35: #{patch_merging_forward.1} parent=31 // pred_region
        %s398 = smul.u32 8, %s19
      $region36: #{patch_merging_forward.1} parent=31 // pred_fallthru
        _
    $region32: #{patch_merging_forward.1} parent=5 // pred_fallthru
      _
    %p399 = scmp.le.s32.totalorder 2, %s9
    // Predicated region
    $region37: #{patch_merging_forward.1} parent=5 // pred_check
      %p400 = pneg %p399
    $region38: #{patch_merging_forward.1} parent=5 // pred_check_branch
      %402 = sbr.rel (%p400) target = $region40
    $region39: #{patch_merging_forward.1} parent=5 // pred_region
      %s403 = ssub.s32 %s9, 2
      // Predicated region
      $region41: #{patch_merging_forward.1} parent=39 // pred_check
        %p404 = pneg %p130
      $region42: #{patch_merging_forward.1} parent=39 // pred_check_branch
        %406 = sbr.rel (%p404) target = $region44
      $region43: #{patch_merging_forward.1} parent=39 // pred_region
        %s407 = smul.u32 8, %s21
        %p408 = scmp.lt.s32.totalorder %s407, 15
        %s409 = scalar_select %p408, %s407, 15
        %p410 = scmp.lt.s32.totalorder %s20, 0
        %s411 = scalar_select %p410, %s20, 0
        %s412 = sadd.s32 %s411, %s409
        %s413 = smul.addr %s412, 4
        %s414 = scalar_lea.vmem %s3, %s413
      $region44: #{patch_merging_forward.1} parent=39 // pred_fallthru
        _
    $region40: #{patch_merging_forward.1} parent=5 // pred_fallthru
      _
  $region6: #{patch_merging_forward.1} parent=0 // loop_footer
    %s13 = sadd.s32 1, %s9
  $region7: #{patch_merging_forward.1} parent=0 // loop_footer_branch
    %8 = sbr.rel target = $region3
  $region8: #{patch_merging_forward.1} parent=0 // loop_exit
    _

</llo_original>
